<compile_context>
chip_gen: v7x
topology: tpu7x:2x2x1
jax: 0.10.0
libtpu: 0.0.40
codegen_flags: <defaults>
</compile_context>

<pallas_src>
import functools

import jax
import jax.numpy as jnp
from jax.experimental import pallas as pl
from jax.experimental.pallas import tpu as pltpu


# ---------------------------------------------------------------------------
# Shared fused conv chain on one (features x TM-pixels) tile
# ---------------------------------------------------------------------------
def _conv_chain(tap, wb, num_layers, lag, TM, compute_dtype):
    """tap(dl) -> (C_in, TM) slice of the halo tile shifted by dl rows.

    wb = [w1f, b1, w2, b2, ...]:
      w1f : (H1, lag*C_in)  fused first-layer taps (compute_dtype)
      wi  : (C_out, C_in)   1x1 conv weights (compute_dtype)
      bi  : (C_out, 1)      f32 bias columns (broadcast along lanes)
    Returns (out_dim, TM) float32.
    """
    # Layer 0: one matmul with K = lag*C_in (taps fused — no per-tap
    # accumulator passes, lane relayout of the shifted slices paid once).
    stacked = jnp.concatenate([tap(dl) for dl in range(lag)], axis=0)
    h = jnp.dot(wb[0][...], stacked, preferred_element_type=jnp.float32)
    h = h + wb[1][...]
    if num_layers > 1:
        h = jnp.maximum(h, 0.0)

    # Remaining 1x1 convs: (Cout, Cin) @ (Cin, TM) + bias (+ ReLU).
    for i in range(1, num_layers):
        h = jnp.dot(wb[2 * i][...], h.astype(compute_dtype),
                    preferred_element_type=jnp.float32)
        h = h + wb[2 * i + 1][...]
        if i < num_layers - 1:
            h = jnp.maximum(h, 0.0)
    return h


# ---------------------------------------------------------------------------
# Path A kernel: T == 1, X auto-pipelined (whole halo slab per batch element)
# ---------------------------------------------------------------------------
def _g_i_auto_kernel(num_layers, lag, W, TM, compute_dtype, *refs):
    x_ref = refs[0]                       # (C_in, halo) VMEM, auto-DMA'd
    n_wb = 2 * num_layers
    wb = refs[1:1 + n_wb]
    o_ref = refs[1 + n_wb]                # (out_dim, TM) VMEM output block

    h = _conv_chain(lambda dl: x_ref[:, pl.ds(dl * W, TM)],
                    wb, num_layers, lag, TM, compute_dtype)
    o_ref[...] = h.astype(o_ref.dtype)


# ---------------------------------------------------------------------------
# Path B kernel: T > 1, manual double-buffered halo DMA + cross-batch prefetch
# ---------------------------------------------------------------------------
def _g_i_tiled_kernel(num_layers, lag, W, TM, compute_dtype, *refs):
    x_hbm = refs[0]                       # (N, C_in, needed) in HBM (pl.ANY)
    n_wb = 2 * num_layers
    wb = refs[1:1 + n_wb]
    o_ref = refs[1 + n_wb]                # (out_dim, TM) VMEM output block
    x_buf, sem = refs[2 + n_wb:]          # (2, C_in, halo) scratch, DMA sems

    n = pl.program_id(0)
    t = pl.program_id(1)
    N = pl.num_programs(0)
    T = pl.num_programs(1)
    halo = TM + (lag - 1) * W

    g = n * T + t                         # global linear step index
    slot = g % 2

    def tile_copy(nn, tt, sl):
        return pltpu.make_async_copy(
            x_hbm.at[nn, :, pl.ds(tt * TM, halo)],
            x_buf.at[sl],
            sem.at[sl])

    # Prime only once, at the very first grid step (the only exposed DMA).
    @pl.when(g == 0)
    def _():
        tile_copy(n, t, slot).start()

    # Prefetch the next grid step's tile: next tile of this batch element,
    # or (cross-batch) the first tile of the next batch element.
    @pl.when(t + 1 < T)
    def _():
        tile_copy(n, t + 1, 1 - slot).start()

    @pl.when(jnp.logical_and(t + 1 == T, n + 1 < N))
    def _():
        tile_copy(n + 1, 0, 1 - slot).start()

    # Wait for this step's halo tile (TM pixels + (lag-1)*W halo).
    tile_copy(n, t, slot).wait()

    xb = x_buf.at[slot]                   # ref view, sliced per tap below
    h = _conv_chain(lambda dl: xb[:, pl.ds(dl * W, TM)],
                    wb, num_layers, lag, TM, compute_dtype)
    o_ref[...] = h.astype(o_ref.dtype)


# ---------------------------------------------------------------------------
# Forward wrapper
# ---------------------------------------------------------------------------
def g_i_forward(X, params, lag, tile_m=8192, compute_dtype=jnp.float32):
    """X: (N, in_dim, H, W) NCHW float32. Returns (N, out_dim, H-lag+1, W)."""
    N, C_in, H, W = X.shape
    Hout = H - lag + 1
    Mb = Hout * W                          # output pixels per batch element
    num_layers = len(params)
    out_dim = params[-1][0].shape[0]

    # Pixel tile = lane dim, always a multiple of 128 (lane-dense stores).
    if Mb <= tile_m:
        TM = ((Mb + 127) // 128) * 128
        T = 1
    else:
        TM = max(128, (tile_m // 128) * 128)
        T = pl.cdiv(Mb, TM)
    halo = TM + (lag - 1) * W
    needed = (T - 1) * TM + halo           # >= H*W since T*TM >= Mb

    # Free reshape to (N, Cin, H*W); pad pixel axis so every halo is in-bounds
    # (and, for T == 1, so the BlockSpec covers the full array dims).
    X3 = X.astype(compute_dtype).reshape(N, C_in, H * W)
    if needed > H * W:
        X3 = jnp.pad(X3, ((0, 0), (0, 0), (0, needed - H * W)))

    # Weights in transposed-chain layout. Layer 0 fused: (H1, lag*Cin) with
    # column index dl*Cin + c  <=>  stacked operand row order in the kernel.
    wb_args = []
    for i, (w, b) in enumerate(params):
        c_out = w.shape[0]
        if i == 0:
            w_f = jnp.transpose(w[:, :, :, 0], (0, 2, 1)).reshape(
                c_out, lag * C_in)
        else:
            w_f = w[:, :, 0, 0]
        wb_args.append(w_f.astype(compute_dtype))
        b_col = (jnp.zeros((c_out, 1), jnp.float32) if b is None
                 else b.reshape(c_out, 1).astype(jnp.float32))
        wb_args.append(b_col)

    if T == 1:
        # ---- Path A: auto-pipelined input slab, one grid step per batch. ---
        kernel = functools.partial(
            _g_i_auto_kernel, num_layers, lag, W, TM, compute_dtype)
        in_specs = [pl.BlockSpec((None, C_in, needed), lambda n: (n, 0, 0))]
        for a in wb_args:                   # resident weights/biases
            in_specs.append(
                pl.BlockSpec(a.shape, lambda n, nd=a.ndim: (0,) * nd))
        out3 = pl.pallas_call(
            kernel,
            out_shape=jax.ShapeDtypeStruct((N, out_dim, TM), jnp.float32),
            grid_spec=pltpu.PrefetchScalarGridSpec(
                num_scalar_prefetch=0,
                grid=(N,),
                in_specs=in_specs,
                out_specs=pl.BlockSpec((None, out_dim, TM),
                                       lambda n: (n, 0, 0))),
            compiler_params=pltpu.CompilerParams(
                dimension_semantics=("parallel",)),
        )(X3, *wb_args)
    else:
        # ---- Path B: manual halo DMA, double buffer, cross-batch prefetch. -
        kernel = functools.partial(
            _g_i_tiled_kernel, num_layers, lag, W, TM, compute_dtype)
        in_specs = [pl.BlockSpec(memory_space=pl.ANY)]   # X stays in HBM
        for a in wb_args:
            in_specs.append(
                pl.BlockSpec(a.shape, lambda n, t, nd=a.ndim: (0,) * nd))
        out3 = pl.pallas_call(
            kernel,
            out_shape=jax.ShapeDtypeStruct((N, out_dim, T * TM), jnp.float32),
            grid_spec=pltpu.PrefetchScalarGridSpec(
                num_scalar_prefetch=0,
                grid=(N, T),
                in_specs=in_specs,
                out_specs=pl.BlockSpec((None, out_dim, TM),
                                       lambda n, t: (n, 0, t)),
                scratch_shapes=[
                    pltpu.VMEM((2, C_in, halo), compute_dtype),
                    pltpu.SemaphoreType.DMA((2,)),
                ]),
            # Both axes sequential: required for the cross-batch prefetch
            # chain (single-TC v5e/v6e; on v7x prefer the T==1 path instead).
            compiler_params=pltpu.CompilerParams(
                dimension_semantics=("arbitrary", "arbitrary")),
        )(X3, *wb_args)

    if out3.shape[-1] > Mb:
        out3 = out3[:, :, :Mb]
    return out3.reshape(N, out_dim, Hout, W)          # free reshape


# ---------------------------------------------------------------------------
# Parameter init (xavier_normal_(0.1), zero bias — PyTorch conv layout)
# ---------------------------------------------------------------------------
def init_g_i_params(key, in_dim, h_dims, out_dim, lag, bias=True, gain=0.1):
    dims = [in_dim] + list(h_dims) + [out_dim]
    params = []
    for i in range(len(dims) - 1):
        c_in, c_out = dims[i], dims[i + 1]
        kh = lag if i == 0 else 1
        fan_in = c_in * kh
        fan_out = c_out * kh
        std = gain * jnp.sqrt(2.0 / (fan_in + fan_out))
        key, sub = jax.random.split(key)
        w = std * jax.random.normal(sub, (c_out, c_in, kh, 1),
                                    dtype=jnp.float32)
        b = jnp.zeros((c_out,), dtype=jnp.float32) if bias else None
        params.append((w, b))
    return params


# ---------------------------------------------------------------------------
# Pure-JAX reference (same math via lax.conv)
# ---------------------------------------------------------------------------
def g_i_reference(X, params, lag):
    x = X
    n_layers = len(params)
    for i, (w, b) in enumerate(params):
        x = jax.lax.conv_general_dilated(
            x, w, window_strides=(1, 1), padding="VALID",
            dimension_numbers=("NCHW", "OIHW", "NCHW"),
            precision=jax.lax.Precision.HIGHEST)
        if b is not None:
            x = x + b.reshape(1, -1, 1, 1)
        if i < n_layers - 1:
            x = jnp.maximum(x, 0.0)
    return x


if __name__ == "__main__":
    N, in_dim, H, W = 2, 4, 16, 16
    h_dims = [32, 16]
    out_dim = 3
    lag = 3

    key = jax.random.PRNGKey(0)
    key_x, key_p = jax.random.split(key)
    X = jax.random.normal(key_x, (N, in_dim, H, W), dtype=jnp.float32)
    params = init_g_i_params(key_p, in_dim, h_dims, out_dim, lag, bias=True)

    ref = jax.block_until_ready(g_i_reference(X, params, lag))

    # 1) Default path: T == 1, auto-pipelined input slab, lane-dense TM.
    out = jax.block_until_ready(g_i_forward(X, params, lag))
    assert out.shape == (N, out_dim, H - lag + 1, W), out.shape
    assert jnp.allclose(out, ref, atol=1e-4, rtol=1e-4), \
        float(jnp.max(jnp.abs(out - ref)))

    # 2) Multi-tile path: double-buffered halo DMA + cross-batch prefetch.
    out_t = jax.block_until_ready(g_i_forward(X, params, lag, tile_m=128))
    assert jnp.allclose(out_t, ref, atol=1e-4, rtol=1e-4), \
        float(jnp.max(jnp.abs(out_t - ref)))

    # 3) No-hidden-layer variant (single (lag,1) conv, no activation).
    params0 = init_g_i_params(key_p, in_dim, [], out_dim, lag, bias=True)
    ref0 = jax.block_until_ready(g_i_reference(X, params0, lag))
    out0 = jax.block_until_ready(g_i_forward(X, params0, lag))
    assert jnp.allclose(out0, ref0, atol=1e-4, rtol=1e-4), \
        float(jnp.max(jnp.abs(out0 - ref0)))

    # 4) bf16 operands (f32 accumulate / bias / ReLU): relaxed tolerance.
    out_bf = jax.block_until_ready(
        g_i_forward(X, params, lag, compute_dtype=jnp.bfloat16))
    assert jnp.allclose(out_bf, ref, atol=2e-2, rtol=2e-2), \
        float(jnp.max(jnp.abs(out_bf - ref)))

    print("KERNEL_OK")
</pallas_src>

<mosaic_0001>
module attributes {stable_mosaic.version = 11 : i64} {
  func.func @_g_i_auto_kernel(%arg0: i32, %arg1: memref<1x4x288xf32, #tpu.memory_space<vmem>>, %arg2: memref<32x12xf32, #tpu.memory_space<vmem>>, %arg3: memref<32x1xf32, #tpu.memory_space<vmem>>, %arg4: memref<16x32xf32, #tpu.memory_space<vmem>>, %arg5: memref<16x1xf32, #tpu.memory_space<vmem>>, %arg6: memref<3x16xf32, #tpu.memory_space<vmem>>, %arg7: memref<3x1xf32, #tpu.memory_space<vmem>>, %arg8: memref<1x3x256xf32, #tpu.memory_space<vmem>>) attributes {dimension_semantics = [#tpu.dimension_semantics<parallel>], iteration_bounds = array<i64: 2>, scalar_prefetch = 0 : i64, scratch_operands = 0 : i64, tpu.core_type = #tpu.core_type<tc>, window_params = [{transform_indices = @transform_0, window_bounds = array<i64: 1, 4, 288>}, {pipeline_mode = #tpu.pipeline_mode<synchronous>, transform_indices = @transform_1, window_bounds = array<i64: 32, 12>}, {pipeline_mode = #tpu.pipeline_mode<synchronous>, transform_indices = @transform_2, window_bounds = array<i64: 32, 1>}, {pipeline_mode = #tpu.pipeline_mode<synchronous>, transform_indices = @transform_3, window_bounds = array<i64: 16, 32>}, {pipeline_mode = #tpu.pipeline_mode<synchronous>, transform_indices = @transform_4, window_bounds = array<i64: 16, 1>}, {pipeline_mode = #tpu.pipeline_mode<synchronous>, transform_indices = @transform_5, window_bounds = array<i64: 3, 16>}, {pipeline_mode = #tpu.pipeline_mode<synchronous>, transform_indices = @transform_6, window_bounds = array<i64: 3, 1>}, {transform_indices = @transform_7, window_bounds = array<i64: 1, 3, 256>}]} {
    %c0 = arith.constant 0 : index
    %c0_0 = arith.constant 0 : index
    %c0_1 = arith.constant 0 : index
    %0 = vector.load %arg1[%c0, %c0_0, %c0_1] : memref<1x4x288xf32, #tpu.memory_space<vmem>>, vector<1x4x256xf32>
    %1 = vector.shape_cast %0 : vector<1x4x256xf32> to vector<4x256xf32>
    %c0_2 = arith.constant 0 : index
    %c0_3 = arith.constant 0 : index
    %c16 = arith.constant 16 : index
    %2 = vector.load %arg1[%c0_2, %c0_3, %c16] : memref<1x4x288xf32, #tpu.memory_space<vmem>>, vector<1x4x256xf32>
    %3 = vector.shape_cast %2 : vector<1x4x256xf32> to vector<4x256xf32>
    %c0_4 = arith.constant 0 : index
    %c0_5 = arith.constant 0 : index
    %c32 = arith.constant 32 : index
    %4 = vector.load %arg1[%c0_4, %c0_5, %c32] : memref<1x4x288xf32, #tpu.memory_space<vmem>>, vector<1x4x256xf32>
    %5 = vector.shape_cast %4 : vector<1x4x256xf32> to vector<4x256xf32>
    %6 = tpu.concatenate %1, %3, %5 in 0 : vector<4x256xf32>, vector<4x256xf32>, vector<4x256xf32> -> vector<12x256xf32>
    %c0_6 = arith.constant 0 : index
    %c0_7 = arith.constant 0 : index
    %7 = vector.load %arg2[%c0_6, %c0_7] : memref<32x12xf32, #tpu.memory_space<vmem>>, vector<32x12xf32>
    %cst = arith.constant dense<0.000000e+00> : vector<32x256xf32>
    %8 = tpu.matmul %7, %6, %cst {dimension_numbers = #tpu.dot_dimension_numbers<[1], [0], [0], [1], [0, 0, 1, 1], [], []>} : vector<32x12xf32>, vector<12x256xf32>, vector<32x256xf32> -> vector<32x256xf32>
    %c0_8 = arith.constant 0 : index
    %c0_9 = arith.constant 0 : index
    %9 = vector.load %arg3[%c0_8, %c0_9] : memref<32x1xf32, #tpu.memory_space<vmem>>, vector<32x1xf32>
    %10 = vector.broadcast %9 : vector<32x1xf32> to vector<32x256xf32>
    %11 = arith.addf %8, %10 : vector<32x256xf32>
    %cst_10 = arith.constant 0.000000e+00 : f32
    %12 = vector.broadcast %cst_10 : f32 to vector<32x256xf32>
    %13 = arith.maximumf %11, %12 : vector<32x256xf32>
    %c0_11 = arith.constant 0 : index
    %c0_12 = arith.constant 0 : index
    %14 = vector.load %arg4[%c0_11, %c0_12] : memref<16x32xf32, #tpu.memory_space<vmem>>, vector<16x32xf32>
    %cst_13 = arith.constant dense<0.000000e+00> : vector<16x256xf32>
    %15 = tpu.matmul %14, %13, %cst_13 {dimension_numbers = #tpu.dot_dimension_numbers<[1], [0], [0], [1], [0, 0, 1, 1], [], []>} : vector<16x32xf32>, vector<32x256xf32>, vector<16x256xf32> -> vector<16x256xf32>
    %c0_14 = arith.constant 0 : index
    %c0_15 = arith.constant 0 : index
    %16 = vector.load %arg5[%c0_14, %c0_15] : memref<16x1xf32, #tpu.memory_space<vmem>>, vector<16x1xf32>
    %17 = vector.broadcast %16 : vector<16x1xf32> to vector<16x256xf32>
    %18 = arith.addf %15, %17 : vector<16x256xf32>
    %cst_16 = arith.constant 0.000000e+00 : f32
    %19 = vector.broadcast %cst_16 : f32 to vector<16x256xf32>
    %20 = arith.maximumf %18, %19 : vector<16x256xf32>
    %c0_17 = arith.constant 0 : index
    %c0_18 = arith.constant 0 : index
    %21 = vector.load %arg6[%c0_17, %c0_18] : memref<3x16xf32, #tpu.memory_space<vmem>>, vector<3x16xf32>
    %cst_19 = arith.constant dense<0.000000e+00> : vector<3x256xf32>
    %22 = tpu.matmul %21, %20, %cst_19 {dimension_numbers = #tpu.dot_dimension_numbers<[1], [0], [0], [1], [0, 0, 1, 1], [], []>} : vector<3x16xf32>, vector<16x256xf32>, vector<3x256xf32> -> vector<3x256xf32>
    %c0_20 = arith.constant 0 : index
    %c0_21 = arith.constant 0 : index
    %23 = vector.load %arg7[%c0_20, %c0_21] : memref<3x1xf32, #tpu.memory_space<vmem>>, vector<3x1xf32>
    %24 = vector.broadcast %23 : vector<3x1xf32> to vector<3x256xf32>
    %25 = arith.addf %22, %24 : vector<3x256xf32>
    %c0_22 = arith.constant 0 : index
    %c0_23 = arith.constant 0 : index
    %c0_24 = arith.constant 0 : index
    %26 = vector.load %arg8[%c0_22, %c0_23, %c0_24] : memref<1x3x256xf32, #tpu.memory_space<vmem>>, vector<1x3x256xf32>
    %27 = vector.shape_cast %26 : vector<1x3x256xf32> to vector<3x256xf32>
    %28 = vector.shape_cast %25 : vector<3x256xf32> to vector<1x3x256xf32>
    tpu.vector_store %arg8[%c0_22, %c0_23, %c0_24], %28 {strides = array<i32>} : memref<1x3x256xf32, #tpu.memory_space<vmem>>, vector<1x3x256xf32>,
    return
  }
  func.func @transform_0(%arg0: i32) -> (i32, i32, i32) {
    %c0_i32 = arith.constant 0 : i32
    %c0_i32_0 = arith.constant 0 : i32
    %c0_i32_1 = arith.constant 0 : i32
    return %arg0, %c0_i32, %c0_i32_0 : i32, i32, i32
  }
  func.func @transform_1(%arg0: i32) -> (i32, i32) {
    %c0_i32 = arith.constant 0 : i32
    %c0_i32_0 = arith.constant 0 : i32
    %c0_i32_1 = arith.constant 0 : i32
    return %c0_i32, %c0_i32_0 : i32, i32
  }
  func.func @transform_2(%arg0: i32) -> (i32, i32) {
    %c0_i32 = arith.constant 0 : i32
    %c0_i32_0 = arith.constant 0 : i32
    %c0_i32_1 = arith.constant 0 : i32
    return %c0_i32, %c0_i32_0 : i32, i32
  }
  func.func @transform_3(%arg0: i32) -> (i32, i32) {
    %c0_i32 = arith.constant 0 : i32
    %c0_i32_0 = arith.constant 0 : i32
    %c0_i32_1 = arith.constant 0 : i32
    return %c0_i32, %c0_i32_0 : i32, i32
  }
  func.func @transform_4(%arg0: i32) -> (i32, i32) {
    %c0_i32 = arith.constant 0 : i32
    %c0_i32_0 = arith.constant 0 : i32
    %c0_i32_1 = arith.constant 0 : i32
    return %c0_i32, %c0_i32_0 : i32, i32
  }
  func.func @transform_5(%arg0: i32) -> (i32, i32) {
    %c0_i32 = arith.constant 0 : i32
    %c0_i32_0 = arith.constant 0 : i32
    %c0_i32_1 = arith.constant 0 : i32
    return %c0_i32, %c0_i32_0 : i32, i32
  }
  func.func @transform_6(%arg0: i32) -> (i32, i32) {
    %c0_i32 = arith.constant 0 : i32
    %c0_i32_0 = arith.constant 0 : i32
    %c0_i32_1 = arith.constant 0 : i32
    return %c0_i32, %c0_i32_0 : i32, i32
  }
  func.func @transform_7(%arg0: i32) -> (i32, i32, i32) {
    %c0_i32 = arith.constant 0 : i32
    %c0_i32_0 = arith.constant 0 : i32
    %c0_i32_1 = arith.constant 0 : i32
    return %arg0, %c0_i32, %c0_i32_0 : i32, i32, i32
  }
}

</mosaic_0001>

<llo_original>
// kernel: tpu_custom_call.1
$region0: #{tpu_custom_call.1}
  #allocation0 [shape = 'u32[]', space=smem, size = 0x4, offset = 0x4, fixed_abs, tag = 'smem constant byte address 0x4 - core index']
  #allocation1 [shape = 'u32[144,128]{1,0:T(1,128)}', space=vmem, size = 0x12000, scoped, tag = 'internal scratch']
  %s0 = inlined_call_operand.vmem [shape: f32[2,4,288], index: 0, kind: input, shape index: {}]
  %s1 = inlined_call_operand.vmem [shape: f32[32,12], index: 1, kind: input, shape index: {}]
  %s2 = inlined_call_operand.vmem [shape: f32[32,1], index: 2, kind: input, shape index: {}]
  %s3 = inlined_call_operand.vmem [shape: f32[16,32], index: 3, kind: input, shape index: {}]
  %s4 = inlined_call_operand.vmem [shape: f32[16,1], index: 4, kind: input, shape index: {}]
  %s5 = inlined_call_operand.vmem [shape: f32[3,16], index: 5, kind: input, shape index: {}]
  %s6 = inlined_call_operand.vmem [shape: f32[3,1], index: 6, kind: input, shape index: {}]
  %s7 = inlined_call_operand.vmem [shape: f32[2,3,256], index: 7, kind: output, shape index: {}]
  %s8 = sld [smem:[#allocation0]]
  $region61: #{tpu_custom_call.1} parent=0
    _
  %s10 = ssub.s32 1, %s8
  %s11 = scalar_select 0, %s10, %s8
  loop: start=0, step=1, limit=4
  $region2: #{tpu_custom_call.1} parent=0 // loop_pre_header
    _
  $region3: #{tpu_custom_call.1} parent=0 // loop_header
    %s13 = sphi 0, %s17
    %p14 = scmp.ge.s32.totalorder %s13, 4
    %s23 = sphi 0, %s25
    %s26 = sphi 0, %s23
    %s27 = sphi 0, %s26
    %s43 = sphi 0, %s27
    %s47 = sphi 0, %s47
    %s49 = sphi 0, %s47
    %s50 = sphi 0, %s49
    %s64 = sphi 0, %s50
    %s68 = sphi 0, %s68
    %s70 = sphi 0, %s68
    %s71 = sphi 0, %s70
    %s85 = sphi 0, %s71
    %s89 = sphi 0, %s89
    %s91 = sphi 0, %s89
    %s92 = sphi 0, %s91
    %s106 = sphi 0, %s92
    %s110 = sphi 0, %s110
    %s112 = sphi 0, %s110
    %s113 = sphi 0, %s112
    %s127 = sphi 0, %s113
    %s131 = sphi 0, %s131
    %s133 = sphi 0, %s131
    %s134 = sphi 0, %s133
    %s148 = sphi 0, %s134
    %s152 = sphi 0, %s152
    %s154 = sphi 0, %s152
    %s155 = sphi 0, %s154
    %s169 = sphi 0, %s155
    %s175 = sphi 0, %s177
    %s178 = sphi 0, %s175
    %s179 = sphi 0, %s178
    %s195 = sphi 0, %s179
  $region4: #{tpu_custom_call.1} parent=0 // loop_header_branch
    %16 = sbr.rel (%p14) target = $region8
  $region5: #{tpu_custom_call.1} parent=0 // loop_body
    %s18 = ssub.s32 %s13, 1
    %s19 = ssub.s32 %s13, 2
    %s20 = sadd.s32 %s13, 1
    %s21 = ssub.s32 %s13, %s20
    %p22 = scmp.eq.s32.totalorder %s21, 0
    %s24 = sadd.s32 %s23, 1
    %s25 = scalar_select %p22, %s23, %s24
    %p28 = pneg %p22
    %p29 = scmp.eq.s32.totalorder %s13, 1
    %p30 = por %p28, %p29
    %p31 = scmp.ne.s32.totalorder %s23, %s26
    %p32 = scmp.eq.s32.totalorder %s13, 0
    %p33 = por %p31, %p32
    %p34 = scmp.ne.s32.totalorder %s23, %s26
    %p35 = scmp.eq.s32.totalorder %s18, 1
    %p36 = por %p34, %p35
    %p37 = scmp.ne.s32.totalorder %s26, %s27
    %p38 = scmp.eq.s32.totalorder %s18, 0
    %p39 = por %p37, %p38
    %p40 = scmp.ne.s32.totalorder %s26, %s27
    %p41 = scmp.eq.s32.totalorder %s19, 1
    %p42 = por %p40, %p41
    %p44 = scmp.ne.s32.totalorder %s27, %s43
    %p45 = scmp.eq.s32.totalorder %s19, 0
    %p46 = por %p44, %p45
    %s48 = sadd.s32 %s47, 1
    %p51 = scmp.eq.s32.totalorder %s13, 1
    %p52 = scmp.ne.s32.totalorder %s47, %s49
    %p53 = scmp.eq.s32.totalorder %s13, 0
    %p54 = por %p52, %p53
    %p55 = scmp.ne.s32.totalorder %s47, %s49
    %p56 = scmp.eq.s32.totalorder %s18, 1
    %p57 = por %p55, %p56
    %p58 = scmp.ne.s32.totalorder %s49, %s50
    %p59 = scmp.eq.s32.totalorder %s18, 0
    %p60 = por %p58, %p59
    %p61 = scmp.ne.s32.totalorder %s49, %s50
    %p62 = scmp.eq.s32.totalorder %s19, 1
    %p63 = por %p61, %p62
    %p65 = scmp.ne.s32.totalorder %s50, %s64
    %p66 = scmp.eq.s32.totalorder %s19, 0
    %p67 = por %p65, %p66
    %s69 = sadd.s32 %s68, 1
    %p72 = scmp.eq.s32.totalorder %s13, 1
    %p73 = scmp.ne.s32.totalorder %s68, %s70
    %p74 = scmp.eq.s32.totalorder %s13, 0
    %p75 = por %p73, %p74
    %p76 = scmp.ne.s32.totalorder %s68, %s70
    %p77 = scmp.eq.s32.totalorder %s18, 1
    %p78 = por %p76, %p77
    %p79 = scmp.ne.s32.totalorder %s70, %s71
    %p80 = scmp.eq.s32.totalorder %s18, 0
    %p81 = por %p79, %p80
    %p82 = scmp.ne.s32.totalorder %s70, %s71
    %p83 = scmp.eq.s32.totalorder %s19, 1
    %p84 = por %p82, %p83
    %p86 = scmp.ne.s32.totalorder %s71, %s85
    %p87 = scmp.eq.s32.totalorder %s19, 0
    %p88 = por %p86, %p87
    %s90 = sadd.s32 %s89, 1
    %p93 = scmp.eq.s32.totalorder %s13, 1
    %p94 = scmp.ne.s32.totalorder %s89, %s91
    %p95 = scmp.eq.s32.totalorder %s13, 0
    %p96 = por %p94, %p95
    %p97 = scmp.ne.s32.totalorder %s89, %s91
    %p98 = scmp.eq.s32.totalorder %s18, 1
    %p99 = por %p97, %p98
    %p100 = scmp.ne.s32.totalorder %s91, %s92
    %p101 = scmp.eq.s32.totalorder %s18, 0
    %p102 = por %p100, %p101
    %p103 = scmp.ne.s32.totalorder %s91, %s92
    %p104 = scmp.eq.s32.totalorder %s19, 1
    %p105 = por %p103, %p104
    %p107 = scmp.ne.s32.totalorder %s92, %s106
    %p108 = scmp.eq.s32.totalorder %s19, 0
    %p109 = por %p107, %p108
    %s111 = sadd.s32 %s110, 1
    %p114 = scmp.eq.s32.totalorder %s13, 1
    %p115 = scmp.ne.s32.totalorder %s110, %s112
    %p116 = scmp.eq.s32.totalorder %s13, 0
    %p117 = por %p115, %p116
    %p118 = scmp.ne.s32.totalorder %s110, %s112
    %p119 = scmp.eq.s32.totalorder %s18, 1
    %p120 = por %p118, %p119
    %p121 = scmp.ne.s32.totalorder %s112, %s113
    %p122 = scmp.eq.s32.totalorder %s18, 0
    %p123 = por %p121, %p122
    %p124 = scmp.ne.s32.totalorder %s112, %s113
    %p125 = scmp.eq.s32.totalorder %s19, 1
    %p126 = por %p124, %p125
    %p128 = scmp.ne.s32.totalorder %s113, %s127
    %p129 = scmp.eq.s32.totalorder %s19, 0
    %p130 = por %p128, %p129
    %s132 = sadd.s32 %s131, 1
    %p135 = scmp.eq.s32.totalorder %s13, 1
    %p136 = scmp.ne.s32.totalorder %s131, %s133
    %p137 = scmp.eq.s32.totalorder %s13, 0
    %p138 = por %p136, %p137
    %p139 = scmp.ne.s32.totalorder %s131, %s133
    %p140 = scmp.eq.s32.totalorder %s18, 1
    %p141 = por %p139, %p140
    %p142 = scmp.ne.s32.totalorder %s133, %s134
    %p143 = scmp.eq.s32.totalorder %s18, 0
    %p144 = por %p142, %p143
    %p145 = scmp.ne.s32.totalorder %s133, %s134
    %p146 = scmp.eq.s32.totalorder %s19, 1
    %p147 = por %p145, %p146
    %p149 = scmp.ne.s32.totalorder %s134, %s148
    %p150 = scmp.eq.s32.totalorder %s19, 0
    %p151 = por %p149, %p150
    %s153 = sadd.s32 %s152, 1
    %p156 = scmp.eq.s32.totalorder %s13, 1
    %p157 = scmp.ne.s32.totalorder %s152, %s154
    %p158 = scmp.eq.s32.totalorder %s13, 0
    %p159 = por %p157, %p158
    %p160 = scmp.ne.s32.totalorder %s152, %s154
    %p161 = scmp.eq.s32.totalorder %s18, 1
    %p162 = por %p160, %p161
    %p163 = scmp.ne.s32.totalorder %s154, %s155
    %p164 = scmp.eq.s32.totalorder %s18, 0
    %p165 = por %p163, %p164
    %p166 = scmp.ne.s32.totalorder %s154, %s155
    %p167 = scmp.eq.s32.totalorder %s19, 1
    %p168 = por %p166, %p167
    %p170 = scmp.ne.s32.totalorder %s155, %s169
    %p171 = scmp.eq.s32.totalorder %s19, 0
    %p172 = por %p170, %p171
    %s173 = ssub.s32 %s13, %s20
    %p174 = scmp.eq.s32.totalorder %s173, 0
    %s176 = sadd.s32 %s175, 1
    %s177 = scalar_select %p174, %s175, %s176
    %p180 = pneg %p174
    %p181 = scmp.eq.s32.totalorder %s13, 1
    %p182 = por %p180, %p181
    %p183 = scmp.ne.s32.totalorder %s175, %s178
    %p184 = scmp.eq.s32.totalorder %s13, 0
    %p185 = por %p183, %p184
    %p186 = scmp.ne.s32.totalorder %s175, %s178
    %p187 = scmp.eq.s32.totalorder %s18, 1
    %p188 = por %p186, %p187
    %p189 = scmp.ne.s32.totalorder %s178, %s179
    %p190 = scmp.eq.s32.totalorder %s18, 0
    %p191 = por %p189, %p190
    %p192 = scmp.ne.s32.totalorder %s178, %s179
    %p193 = scmp.eq.s32.totalorder %s19, 1
    %p194 = por %p192, %p193
    %p196 = scmp.ne.s32.totalorder %s179, %s195
    %p197 = scmp.eq.s32.totalorder %s19, 0
    %p198 = por %p196, %p197
    %p199 = scmp.le.s32.totalorder 1, %s13
    %p200 = scmp.lt.s32.totalorder %s13, 3
    %p201 = pnand %p199, %p200
    %p202 = pneg %p201
    // Predicated region
    $region9: #{tpu_custom_call.1} parent=5 // pred_check
      _
    $region10: #{tpu_custom_call.1} parent=5 // pred_check_branch
      %204 = sbr.rel (%p201) target = $region12
    $region11: #{tpu_custom_call.1} parent=5 // pred_region
      %s205 = ssub.s32 %s13, 1
      // Predicated region
      $region13: #{tpu_custom_call.1} parent=11 // pred_check
        %p206 = pneg %p60
      $region14: #{tpu_custom_call.1} parent=11 // pred_check_branch
        %208 = sbr.rel (%p206) target = $region16
      $region15: #{tpu_custom_call.1} parent=11 // pred_region
        _
      $region16: #{tpu_custom_call.1} parent=11 // pred_fallthru
        _
      // Predicated region
      $region17: #{tpu_custom_call.1} parent=11 // pred_check
        %p209 = pneg %p81
      $region18: #{tpu_custom_call.1} parent=11 // pred_check_branch
        %211 = sbr.rel (%p209) target = $region20
      $region19: #{tpu_custom_call.1} parent=11 // pred_region
        _
      $region20: #{tpu_custom_call.1} parent=11 // pred_fallthru
        _
      // Predicated region
      $region21: #{tpu_custom_call.1} parent=11 // pred_check
        %p212 = pneg %p102
      $region22: #{tpu_custom_call.1} parent=11 // pred_check_branch
        %214 = sbr.rel (%p212) target = $region24
      $region23: #{tpu_custom_call.1} parent=11 // pred_region
        _
      $region24: #{tpu_custom_call.1} parent=11 // pred_fallthru
        _
      // Predicated region
      $region25: #{tpu_custom_call.1} parent=11 // pred_check
        %p215 = pneg %p123
      $region26: #{tpu_custom_call.1} parent=11 // pred_check_branch
        %217 = sbr.rel (%p215) target = $region28
      $region27: #{tpu_custom_call.1} parent=11 // pred_region
        _
      $region28: #{tpu_custom_call.1} parent=11 // pred_fallthru
        _
      // Predicated region
      $region29: #{tpu_custom_call.1} parent=11 // pred_check
        %p218 = pneg %p144
      $region30: #{tpu_custom_call.1} parent=11 // pred_check_branch
        %220 = sbr.rel (%p218) target = $region32
      $region31: #{tpu_custom_call.1} parent=11 // pred_region
        _
      $region32: #{tpu_custom_call.1} parent=11 // pred_fallthru
        _
      // Predicated region
      $region33: #{tpu_custom_call.1} parent=11 // pred_check
        %p221 = pneg %p165
      $region34: #{tpu_custom_call.1} parent=11 // pred_check_branch
        %223 = sbr.rel (%p221) target = $region36
      $region35: #{tpu_custom_call.1} parent=11 // pred_region
        _
      $region36: #{tpu_custom_call.1} parent=11 // pred_fallthru
        _
    $region12: #{tpu_custom_call.1} parent=5 // pred_fallthru
      _
    %p224 = scmp.lt.s32.totalorder %s13, 2
    // Predicated region
    $region37: #{tpu_custom_call.1} parent=5 // pred_check
      %p225 = pneg %p224
    $region38: #{tpu_custom_call.1} parent=5 // pred_check_branch
      %227 = sbr.rel (%p225) target = $region40
    $region39: #{tpu_custom_call.1} parent=5 // pred_region
      // Predicated region
      $region41: #{tpu_custom_call.1} parent=39 // pred_check
        %p228 = pneg %p33
      $region42: #{tpu_custom_call.1} parent=39 // pred_check_branch
        %230 = sbr.rel (%p228) target = $region44
      $region43: #{tpu_custom_call.1} parent=39 // pred_region
        %p231 = scmp.lt.s32.totalorder %s13, 1
        %s232 = scalar_select %p231, %s13, 1
        %s233 = smul.addr %s232, 3
        %s234 = smul.addr %s233, 4
        %s235 = scalar_lea.vmem %s0, %s234
      $region44: #{tpu_custom_call.1} parent=39 // pred_fallthru
        _
    $region40: #{tpu_custom_call.1} parent=5 // pred_fallthru
      _
    %p236 = scmp.le.s32.totalorder 1, %s13
    %p237 = scmp.lt.s32.totalorder %s13, 3
    %p238 = pnand %p236, %p237
    %p239 = pneg %p238
    // Predicated region
    $region45: #{tpu_custom_call.1} parent=5 // pred_check
      _
    $region46: #{tpu_custom_call.1} parent=5 // pred_check_branch
      %241 = sbr.rel (%p238) target = $region48
    $region47: #{tpu_custom_call.1} parent=5 // pred_region
      %s242 = ssub.s32 %s13, 1
      %p243 = scmp.lt.s32.totalorder %s18, 1
      %s244 = scalar_select %p243, %s18, 1
      %s245 = smul.addr %s244, 3
      %s246 = smul.addr %s245, 4
      %s247 = scalar_lea.vmem %s0, %s246
      %p248 = pneg %p39
      %p249 = pneg %p36
      %p250 = pneg %p60
      %p251 = pneg %p57
      %p252 = pneg %p81
      %p253 = pneg %p78
      %p254 = pneg %p102
      %p255 = pneg %p99
      %p256 = pneg %p123
      %p257 = pneg %p120
      %p258 = pneg %p144
      %p259 = pneg %p141
      %p260 = pneg %p165
      %p261 = pneg %p162
      %p262 = pneg %p191
      %p263 = pneg %p188
      %p264 = scmp.lt.s32.totalorder %s18, 1
      %s265 = scalar_select %p264, %s18, 1
      %s266 = smul.addr %s265, 2
      %s267 = smul.addr %s266, 4
      %s268 = scalar_lea.vmem %s7, %s267
      %p269 = scmp.lt.s32.totalorder %s18, 1
      %s270 = scalar_select %p269, %s18, 1
      %s271 = smul.addr %s270, 3
      %s272 = smul.addr %s271, 4
      %s273 = scalar_lea.vmem %s0, %s272
      %p274 = scmp.lt.s32.totalorder %s18, 1
      %s275 = scalar_select %p274, %s18, 1
      %s276 = smul.addr %s275, 2
      %s277 = smul.addr %s276, 4
      %s278 = scalar_lea.vmem %s7, %s277
      %v279 = vld [vmem:[%s273] sm:$0xff]
      %v280 = vld [vmem:[%s273 + $0x8] sm:$0xf]
      %v282 = vcombine.high %v279, %v279
      %v285 = vcombine.low %v279, %v279
      %v286 = vcombine.low %v280, %v280
      %287 = vrot.lane.b32.xlu0 %v285, 112
      %v288 = vpop.permute.xlu0 %287
      %289 = vrot.lane.b32.xlu0 %v279, 112
      %v290 = vpop.permute.xlu0 %289
      %291 = vrot.lane.b32.xlu0 %v286, 112
      %v292 = vpop.permute.xlu0 %291
      %vm293 = vcmask 916480
      %v294 = vsel %vm293, %v288, %v290
      %v295 = vsel %vm293, %v290, %v292
      %298 = vrot.lane.b32.xlu0 %v279, 96
      %v299 = vpop.permute.xlu0 %298
      %300 = vrot.lane.b32.xlu0 %v282, 96
      %v301 = vpop.permute.xlu0 %300
      %302 = vrot.lane.b32.xlu0 %v280, 96
      %v303 = vpop.permute.xlu0 %302
      %vm304 = vcmask 785408
      %v305 = vsel %vm304, %v299, %v301
      %v306 = vsel %vm304, %v301, %v303
      %vm307 = vcmask 1043456
      %v308 = vsel %vm307, %v279, %v294
      %v309 = vsel %vm307, %v282, %v295
      %v310 = vld [vmem:[%s1] sm:$0xff]
      %v311 = vld [vmem:[%s1 + $0x8] sm:$0xff]
      %v312 = vld [vmem:[%s1 + $0x10] sm:$0xff]
      %v313 = vld [vmem:[%s1 + $0x18] sm:$0xff]
      %v314 = vld [vmem:[%s2] sm:$0xff]
      %v315 = vld [vmem:[%s2 + $0x8] sm:$0xff]
      %v316 = vld [vmem:[%s2 + $0x10] sm:$0xff]
      %v317 = vld [vmem:[%s2 + $0x18] sm:$0xff]
      %319 = vset.pattern.permute.xlu0 0
      %320 = vperm.xlu0 %319, %v314
      %v321 = vpop.permute.xlu0 %320
      %324 = vset.pattern.permute.xlu0 0
      %325 = vperm.xlu0 %324, %v315
      %v326 = vpop.permute.xlu0 %325
      %329 = vset.pattern.permute.xlu0 0
      %330 = vperm.xlu0 %329, %v316
      %v331 = vpop.permute.xlu0 %330
      %334 = vset.pattern.permute.xlu0 0
      %335 = vperm.xlu0 %334, %v317
      %v336 = vpop.permute.xlu0 %335
      %vm338 = vcmask 97280
      %v340 = vsel %vm338, %v310, 0
      %v343 = vsel %vm338, %v311, 0
      %v346 = vsel %vm338, %v312, 0
      %v349 = vsel %vm338, %v313, 0
      %v351 = vsel %vm307, %v305, 0
      %v353 = vsel %vm307, %v306, 0
      %355 = vmatprep.subr.mxu0 %v309
      %356 = vmatpush1.msra.mxu0 %v308
      %357 = vmatprep.subr.mxu0 %v353
      %358 = vmatpush1.msra.mxu0 %v351
      %359 = vmatprep.subr.mxu0 0.0
      %360 = vmatpush1.msra.mxu0 0.0
      %361 = vmatprep.subr.mxu0 0.0
      %362 = vmatpush1.msra.mxu0 0.0
      %363 = vmatprep.subr.mxu0 0.0
      %364 = vmatpush1.msra.mxu0 0.0
      %365 = vmatprep.subr.mxu0 0.0
      %366 = vmatpush1.msra.mxu0 0.0
      %367 = vmatprep.subr.mxu0 0.0
      %368 = vmatpush1.msra.mxu0 0.0
      %369 = vmatprep.subr.mxu0 0.0
      %370 = vmatpush1.msra.mxu0 0.0
      %371 = vmatprep.subr.mxu0 0.0
      %372 = vmatpush1.msra.mxu0 0.0
      %373 = vmatprep.subr.mxu0 0.0
      %374 = vmatpush1.msra.mxu0 0.0
      %375 = vmatprep.subr.mxu0 0.0
      %376 = vmatpush1.msra.mxu0 0.0
      %377 = vmatprep.subr.mxu0 0.0
      %378 = vmatpush1.msra.mxu0 0.0
      %379 = vmatprep.subr.mxu0 0.0
      %380 = vmatpush1.msra.mxu0 0.0
      %381 = vmatprep.subr.mxu0 0.0
      %382 = vmatpush1.msra.mxu0 0.0
      %383 = vmatprep.subr.mxu0 0.0
      %384 = vmatpush1.msra.mxu0 0.0
      %385 = vmatprep.subr.mxu0 0.0
      %386 = vmatpush1.msra.mxu0 0.0
      %387 = vmatprep.subr.mxu0 0.0
      %388 = vmatpush1.msra.mxu0 0.0
      %389 = vmatprep.subr.mxu0 0.0
      %390 = vmatpush1.msra.mxu0 0.0
      %391 = vmatprep.subr.mxu0 0.0
      %392 = vmatpush1.msra.mxu0 0.0
      %393 = vmatprep.subr.mxu0 0.0
      %394 = vmatpush1.msra.mxu0 0.0
      %395 = vmatprep.subr.mxu0 0.0
      %396 = vmatpush1.msra.mxu0 0.0
      %397 = vmatprep.subr.mxu0 0.0
      %398 = vmatpush1.msra.mxu0 0.0
      %399 = vmatprep.subr.mxu0 0.0
      %400 = vmatpush1.msra.mxu0 0.0
      %401 = vmatprep.subr.mxu0 0.0
      %402 = vmatpush1.msra.mxu0 0.0
      %403 = vmatprep.subr.mxu0 0.0
      %404 = vmatpush1.msra.mxu0 0.0
      %405 = vmatprep.subr.mxu0 0.0
      %406 = vmatpush1.msra.mxu0 0.0
      %407 = vmatprep.subr.mxu0 0.0
      %408 = vmatpush1.msra.mxu0 0.0
      %409 = vmatprep.subr.mxu0 0.0
      %410 = vmatpush1.msra.mxu0 0.0
      %411 = vmatprep.subr.mxu0 0.0
      %412 = vmatpush1.msra.mxu0 0.0
      %413 = vmatprep.subr.mxu0 0.0
      %414 = vmatpush1.msra.mxu0 0.0
      %415 = vmatprep.subr.mxu0 0.0
      %416 = vmatpush1.msra.mxu0 0.0
      %417 = vmatprep.subr.mxu0 0.0
      %418 = vmatpush1.msra.mxu0 0.0
      %419 = vmatprep.mubr.f32.mxu0 0.0
      %420 = vmatmul.mubr.f32.gmra.mrb[0].mxu0 %v340
      %v421 = vpop.f32.mrb[0].mxu0
      %v422 = vadd.f32 %v321, %v421
      %v423 = vpop.f32.mrb[0].mxu0
      %v424 = vadd.f32 %v321, %v423
      %425 = vmatprep.mubr.f32.mxu0 0.0
      %426 = vmatmul.mubr.f32.gmra.mrb[0].mxu0 %v343
      %v427 = vpop.f32.mrb[0].mxu0
      %v428 = vadd.f32 %v326, %v427
      %v429 = vpop.f32.mrb[0].mxu0
      %v430 = vadd.f32 %v326, %v429
      %431 = vmatprep.mubr.f32.mxu0 0.0
      %432 = vmatmul.mubr.f32.gmra.mrb[0].mxu0 %v346
      %v433 = vpop.f32.mrb[0].mxu0
      %v434 = vadd.f32 %v331, %v433
      %v435 = vpop.f32.mrb[0].mxu0
      %v436 = vadd.f32 %v331, %v435
      %437 = vmatprep.mubr.f32.mxu0 0.0
      %438 = vmatmul.mubr.f32.gmra.mrb[0].mxu0 %v349
      %v439 = vpop.f32.mrb[0].mxu0
      %v440 = vadd.f32 %v336, %v439
      %v441 = vpop.f32.mrb[0].mxu0
      %v442 = vadd.f32 %v336, %v441
      %443 = vdwg.mxu0
      %v444 = vmax.f32 %v422, 0.0
      %v445 = vmax.f32 %v424, 0.0
      %v446 = vmax.f32 %v428, 0.0
      %v447 = vmax.f32 %v430, 0.0
      %v448 = vmax.f32 %v434, 0.0
      %v449 = vmax.f32 %v436, 0.0
      %v450 = vmax.f32 %v440, 0.0
      %v451 = vmax.f32 %v442, 0.0
      %v452 = vld [vmem:[%s3] sm:$0xff]
      %v453 = vld [vmem:[%s3 + $0x8] sm:$0xff]
      %v454 = vld [vmem:[%s4] sm:$0xff]
      %v455 = vld [vmem:[%s4 + $0x8] sm:$0xff]
      %457 = vset.pattern.permute.xlu0 0
      %458 = vperm.xlu0 %457, %v454
      %v459 = vpop.permute.xlu0 %458
      %462 = vset.pattern.permute.xlu0 0
      %463 = vperm.xlu0 %462, %v455
      %v464 = vpop.permute.xlu0 %463
      %vm466 = vcmask 261120
      %v468 = vsel %vm466, %v452, 0
      %v471 = vsel %vm466, %v453, 0
      %473 = vmatprep.subr.mxu0 %v445
      %474 = vmatpush1.msra.mxu0 %v444
      %475 = vmatprep.subr.mxu0 %v447
      %476 = vmatpush1.msra.mxu0 %v446
      %477 = vmatprep.subr.mxu0 %v449
      %478 = vmatpush1.msra.mxu0 %v448
      %479 = vmatprep.subr.mxu0 %v451
      %480 = vmatpush1.msra.mxu0 %v450
      %481 = vmatprep.subr.mxu0 0.0
      %482 = vmatpush1.msra.mxu0 0.0
      %483 = vmatprep.subr.mxu0 0.0
      %484 = vmatpush1.msra.mxu0 0.0
      %485 = vmatprep.subr.mxu0 0.0
      %486 = vmatpush1.msra.mxu0 0.0
      %487 = vmatprep.subr.mxu0 0.0
      %488 = vmatpush1.msra.mxu0 0.0
      %489 = vmatprep.subr.mxu0 0.0
      %490 = vmatpush1.msra.mxu0 0.0
      %491 = vmatprep.subr.mxu0 0.0
      %492 = vmatpush1.msra.mxu0 0.0
      %493 = vmatprep.subr.mxu0 0.0
      %494 = vmatpush1.msra.mxu0 0.0
      %495 = vmatprep.subr.mxu0 0.0
      %496 = vmatpush1.msra.mxu0 0.0
      %497 = vmatprep.subr.mxu0 0.0
      %498 = vmatpush1.msra.mxu0 0.0
      %499 = vmatprep.subr.mxu0 0.0
      %500 = vmatpush1.msra.mxu0 0.0
      %501 = vmatprep.subr.mxu0 0.0
      %502 = vmatpush1.msra.mxu0 0.0
      %503 = vmatprep.subr.mxu0 0.0
      %504 = vmatpush1.msra.mxu0 0.0
      %505 = vmatprep.subr.mxu0 0.0
      %506 = vmatpush1.msra.mxu0 0.0
      %507 = vmatprep.subr.mxu0 0.0
      %508 = vmatpush1.msra.mxu0 0.0
      %509 = vmatprep.subr.mxu0 0.0
      %510 = vmatpush1.msra.mxu0 0.0
      %511 = vmatprep.subr.mxu0 0.0
      %512 = vmatpush1.msra.mxu0 0.0
      %513 = vmatprep.subr.mxu0 0.0
      %514 = vmatpush1.msra.mxu0 0.0
      %515 = vmatprep.subr.mxu0 0.0
      %516 = vmatpush1.msra.mxu0 0.0
      %517 = vmatprep.subr.mxu0 0.0
      %518 = vmatpush1.msra.mxu0 0.0
      %519 = vmatprep.subr.mxu0 0.0
      %520 = vmatpush1.msra.mxu0 0.0
      %521 = vmatprep.subr.mxu0 0.0
      %522 = vmatpush1.msra.mxu0 0.0
      %523 = vmatprep.subr.mxu0 0.0
      %524 = vmatpush1.msra.mxu0 0.0
      %525 = vmatprep.subr.mxu0 0.0
      %526 = vmatpush1.msra.mxu0 0.0
      %527 = vmatprep.subr.mxu0 0.0
      %528 = vmatpush1.msra.mxu0 0.0
      %529 = vmatprep.subr.mxu0 0.0
      %530 = vmatpush1.msra.mxu0 0.0
      %531 = vmatprep.subr.mxu0 0.0
      %532 = vmatpush1.msra.mxu0 0.0
      %533 = vmatprep.subr.mxu0 0.0
      %534 = vmatpush1.msra.mxu0 0.0
      %535 = vmatprep.subr.mxu0 0.0
      %536 = vmatpush1.msra.mxu0 0.0
      %537 = vmatprep.mubr.f32.mxu0 0.0
      %538 = vmatmul.mubr.f32.gmra.mrb[0].mxu0 %v468
      %v539 = vpop.f32.mrb[0].mxu0
      %v540 = vadd.f32 %v459, %v539
      %v541 = vpop.f32.mrb[0].mxu0
      %v542 = vadd.f32 %v459, %v541
      %543 = vmatprep.mubr.f32.mxu0 0.0
      %544 = vmatmul.mubr.f32.gmra.mrb[0].mxu0 %v471
      %v545 = vpop.f32.mrb[0].mxu0
      %v546 = vadd.f32 %v464, %v545
      %v547 = vpop.f32.mrb[0].mxu0
      %v548 = vadd.f32 %v464, %v547
      %549 = vdwg.mxu0
      %v550 = vmax.f32 %v540, 0.0
      %v551 = vmax.f32 %v542, 0.0
      %v552 = vmax.f32 %v546, 0.0
      %v553 = vmax.f32 %v548, 0.0
      %v554 = vld [vmem:[%s5] sm:$0x7]
      %v555 = vld [vmem:[%s6] sm:$0x7]
      %557 = vset.pattern.permute.xlu0 0
      %558 = vperm.xlu0 %557, %v555
      %v559 = vpop.permute.xlu0 %558
      %vm561 = vcmask 130048
      %v563 = vsel %vm561, %v554, 0
      %565 = vmatprep.subr.mxu0 %v551
      %566 = vmatpush1.msra.mxu0 %v550
      %567 = vmatprep.subr.mxu0 %v553
      %568 = vmatpush1.msra.mxu0 %v552
      %569 = vmatprep.subr.mxu0 0.0
      %570 = vmatpush1.msra.mxu0 0.0
      %571 = vmatprep.subr.mxu0 0.0
      %572 = vmatpush1.msra.mxu0 0.0
      %573 = vmatprep.subr.mxu0 0.0
      %574 = vmatpush1.msra.mxu0 0.0
      %575 = vmatprep.subr.mxu0 0.0
      %576 = vmatpush1.msra.mxu0 0.0
      %577 = vmatprep.subr.mxu0 0.0
      %578 = vmatpush1.msra.mxu0 0.0
      %579 = vmatprep.subr.mxu0 0.0
      %580 = vmatpush1.msra.mxu0 0.0
      %581 = vmatprep.subr.mxu0 0.0
      %582 = vmatpush1.msra.mxu0 0.0
      %583 = vmatprep.subr.mxu0 0.0
      %584 = vmatpush1.msra.mxu0 0.0
      %585 = vmatprep.subr.mxu0 0.0
      %586 = vmatpush1.msra.mxu0 0.0
      %587 = vmatprep.subr.mxu0 0.0
      %588 = vmatpush1.msra.mxu0 0.0
      %589 = vmatprep.subr.mxu0 0.0
      %590 = vmatpush1.msra.mxu0 0.0
      %591 = vmatprep.subr.mxu0 0.0
      %592 = vmatpush1.msra.mxu0 0.0
      %593 = vmatprep.subr.mxu0 0.0
      %594 = vmatpush1.msra.mxu0 0.0
      %595 = vmatprep.subr.mxu0 0.0
      %596 = vmatpush1.msra.mxu0 0.0
      %597 = vmatprep.subr.mxu0 0.0
      %598 = vmatpush1.msra.mxu0 0.0
      %599 = vmatprep.subr.mxu0 0.0
      %600 = vmatpush1.msra.mxu0 0.0
      %601 = vmatprep.subr.mxu0 0.0
      %602 = vmatpush1.msra.mxu0 0.0
      %603 = vmatprep.subr.mxu0 0.0
      %604 = vmatpush1.msra.mxu0 0.0
      %605 = vmatprep.subr.mxu0 0.0
      %606 = vmatpush1.msra.mxu0 0.0
      %607 = vmatprep.subr.mxu0 0.0
      %608 = vmatpush1.msra.mxu0 0.0
      %609 = vmatprep.subr.mxu0 0.0
      %610 = vmatpush1.msra.mxu0 0.0
      %611 = vmatprep.subr.mxu0 0.0
      %612 = vmatpush1.msra.mxu0 0.0
      %613 = vmatprep.subr.mxu0 0.0
      %614 = vmatpush1.msra.mxu0 0.0
      %615 = vmatprep.subr.mxu0 0.0
      %616 = vmatpush1.msra.mxu0 0.0
      %617 = vmatprep.subr.mxu0 0.0
      %618 = vmatpush1.msra.mxu0 0.0
      %619 = vmatprep.subr.mxu0 0.0
      %620 = vmatpush1.msra.mxu0 0.0
      %621 = vmatprep.subr.mxu0 0.0
      %622 = vmatpush1.msra.mxu0 0.0
      %623 = vmatprep.subr.mxu0 0.0
      %624 = vmatpush1.msra.mxu0 0.0
      %625 = vmatprep.subr.mxu0 0.0
      %626 = vmatpush1.msra.mxu0 0.0
      %627 = vmatprep.subr.mxu0 0.0
      %628 = vmatpush1.msra.mxu0 0.0
      %629 = vmatprep.mubr.f32.mxu0 0.0
      %630 = vmatmul.mubr.f32.gmra.mrb[0].mxu0 %v563
      %v631 = vpop.f32.mrb[0].mxu0
      %v632 = vadd.f32 %v559, %v631
      %v633 = vpop.f32.mrb[0].mxu0
      %v634 = vadd.f32 %v559, %v633
      %635 = vdwg.mxu0
      %v638 = vcombine.low %v632, %v634
      %640 = vst [vmem:[%s278] sm:$0x77] %v638
      %p641 = scmp.lt.s32.totalorder %s18, 1
      %s642 = scalar_select %p641, %s18, 1
      %s643 = smul.addr %s642, 2
      %s644 = smul.addr %s643, 4
      %s645 = scalar_lea.vmem %s7, %s644
      // Predicated region
      $region49: #{tpu_custom_call.1} parent=47 // pred_check
        %p646 = pneg %p188
      $region50: #{tpu_custom_call.1} parent=47 // pred_check_branch
        %648 = sbr.rel (%p646) target = $region52
      $region51: #{tpu_custom_call.1} parent=47 // pred_region
        _
      $region52: #{tpu_custom_call.1} parent=47 // pred_fallthru
        _
    $region48: #{tpu_custom_call.1} parent=5 // pred_fallthru
      _
    %p649 = scmp.le.s32.totalorder 2, %s13
    // Predicated region
    $region53: #{tpu_custom_call.1} parent=5 // pred_check
      %p650 = pneg %p649
    $region54: #{tpu_custom_call.1} parent=5 // pred_check_branch
      %652 = sbr.rel (%p650) target = $region56
    $region55: #{tpu_custom_call.1} parent=5 // pred_region
      %s653 = ssub.s32 %s13, 2
      // Predicated region
      $region57: #{tpu_custom_call.1} parent=55 // pred_check
        %p654 = pneg %p194
      $region58: #{tpu_custom_call.1} parent=55 // pred_check_branch
        %656 = sbr.rel (%p654) target = $region60
      $region59: #{tpu_custom_call.1} parent=55 // pred_region
        %p657 = scmp.lt.s32.totalorder %s19, 1
        %s658 = scalar_select %p657, %s19, 1
        %s659 = smul.addr %s658, 2
        %s660 = smul.addr %s659, 4
        %s661 = scalar_lea.vmem %s7, %s660
      $region60: #{tpu_custom_call.1} parent=55 // pred_fallthru
        _
    $region56: #{tpu_custom_call.1} parent=5 // pred_fallthru
      _
  $region6: #{tpu_custom_call.1} parent=0 // loop_footer
    %s17 = sadd.s32 1, %s13
  $region7: #{tpu_custom_call.1} parent=0 // loop_footer_branch
    %12 = sbr.rel target = $region3
  $region8: #{tpu_custom_call.1} parent=0 // loop_exit
    _

</llo_original>
